<compile_context>
chip_gen: v6e
topology: v6e:2x2x1
jax: 0.10.0
libtpu: 0.0.40
codegen_flags: <defaults>
</compile_context>

<pallas_src>
import numpy as np
import jax
import jax.numpy as jnp
from jax.experimental import pallas as pl
from jax.experimental.pallas import tpu as pltpu

FC1, FC2, FC3, FC4, FC5 = 512, 256, 64, 16, 1

# Packed-bias layout: every segment starts on a 128-lane boundary.
B1_OFF = 0
B2_OFF = 512
B3_OFF = 768
B4_OFF = 896
B5_OFF = 1024
BIAS_TOTAL = 1152

_SINGLE_STEP_MAX_B = 1024   # one grid step up to this batch size
_LARGE_TILE_B = 1024        # tile beyond that (grid >= 2 -> both v7x TCs busy)


def _round_up(x, m):
    return ((x + m - 1) // m) * m


def _critic_kernel(x_ref, w1_ref, w2s_ref, w2a_ref, w3_ref, w4_ref, w5t_ref,
                   b_ref, out_ref):
    # Fused [tile_b, S+A] input; bf16 cast on the VPU (hidden under fc1 MXU).
    x = x_ref[...].astype(jnp.bfloat16)

    b1 = b_ref[:, B1_OFF:B1_OFF + FC1]
    b2 = b_ref[:, B2_OFF:B2_OFF + FC2]
    b3 = b_ref[:, B3_OFF:B3_OFF + FC3]
    b4 = b_ref[:, B4_OFF:B4_OFF + FC4]
    b5 = b_ref[:, B5_OFF:B5_OFF + FC5]

    # fc1 + ReLU: the action rows of w1 are zero, so this equals fc1(state).
    h1 = jnp.dot(x, w1_ref[...], preferred_element_type=jnp.float32) + b1
    h1 = jnp.maximum(h1, 0.0).astype(jnp.bfloat16)   # only big act stays bf16

    # fc2 on cat(relu(fc1(s)), a): the state rows of w2a are zero.
    h2 = (jnp.dot(h1, w2s_ref[...], preferred_element_type=jnp.float32)
          + jnp.dot(x, w2a_ref[...], preferred_element_type=jnp.float32)
          + b2)
    h2 = jnp.maximum(h2, 0.0)                         # f32 from here on

    # fc3 + ReLU, fc4 + ReLU (tiny f32 matmuls).
    h3 = jnp.maximum(
        jnp.dot(h2, w3_ref[...], preferred_element_type=jnp.float32) + b3, 0.0)
    h4 = jnp.maximum(
        jnp.dot(h3, w4_ref[...], preferred_element_type=jnp.float32) + b4, 0.0)

    # fc5 computed directly in transposed (lane-dense) form:
    #   out[0, b] = sum_k w5t[0, k] * h4[b, k] + b5
    z = jnp.einsum("ok,bk->ob", w5t_ref[...], h4,
                   preferred_element_type=jnp.float32)
    out_ref[...] = z + b5


def critic_forward(state, action, params, *, tile_b=None):
    """state: [B, S] f32, action: [B, A] f32 -> Q-values [B, 1] f32."""
    B, S = state.shape
    A = action.shape[1]

    # One fused f32 input; the bf16 cast happens inside the kernel.
    x = jnp.concatenate(
        [state.astype(jnp.float32), action.astype(jnp.float32)], axis=1)

    if tile_b is None:
        tile_b = _round_up(B, 16) if B <= _SINGLE_STEP_MAX_B else _LARGE_TILE_B
    tile_b = max(16, _round_up(tile_b, 16))
    b_pad = _round_up(B, tile_b)
    if b_pad != B:
        x = jnp.pad(x, ((0, b_pad - B), (0, 0)))
    grid = (b_pad // tile_b,)

    def resident(shape):   # weights / biases: same block every grid step
        return pl.BlockSpec(shape, lambda i: (0, 0))

    flops = 2 * b_pad * ((S + A) * FC1 + FC1 * FC2 + (S + A) * FC2
                         + FC2 * FC3 + FC3 * FC4 + FC4 * FC5)
    param_bytes = sum(int(np.prod(v.shape)) * v.dtype.itemsize
                      for v in params.values())
    bytes_accessed = int(x.size) * 4 + param_bytes + b_pad * 4

    out = pl.pallas_call(
        _critic_kernel,
        out_shape=jax.ShapeDtypeStruct((1, b_pad), jnp.float32),
        grid=grid,
        in_specs=[
            pl.BlockSpec((tile_b, S + A), lambda i: (i, 0)),   # fused input
            resident((S + A, FC1)),     # w1 (zero rows over the action slots)
            resident((FC1, FC2)),       # w2, state part
            resident((S + A, FC2)),     # w2, action part (zero state rows)
            resident((FC2, FC3)),       # w3
            resident((FC3, FC4)),       # w4
            resident((FC5, FC4)),       # w5 in torch [out, in] layout
            resident((1, BIAS_TOTAL)),  # packed biases
        ],
        out_specs=pl.BlockSpec((1, tile_b), lambda i: (0, i)),
        compiler_params=pltpu.CompilerParams(
            dimension_semantics=("parallel",)),
        cost_estimate=pl.CostEstimate(flops=flops, transcendentals=0,
                                      bytes_accessed=bytes_accessed),
    )(x, params["w1p"], params["w2s"], params["w2ap"],
      params["w3"], params["w4"], params["w5t"], params["bias"])

    return out[0, :B].reshape(B, 1)


def _uniform(key, shape, lim, dtype=jnp.float32):
    return jax.random.uniform(key, shape, jnp.float32, -lim, lim).astype(dtype)


def init_params(key, state_size, action_size):
    """Mirror Critic.__init__ + reset_parameters.

    layer_init uses weight.size()[0] == out_features, so fc1..fc4 weights are
    U(+-1/sqrt(out_features)); fc5 weight is U(+-3e-3). Biases keep torch's
    default nn.Linear init U(+-1/sqrt(in_features)) -- reset_parameters does
    not touch them. Weights are stored [in, out] (transpose of torch) except
    w5t, which keeps the torch [out, in] layout for the transposed fc5.
    """
    S, A = state_size, action_size
    ks = jax.random.split(key, 11)
    lim1, lim2, lim3, lim4 = (1.0 / np.sqrt(n) for n in (FC1, FC2, FC3, FC4))

    w1 = _uniform(ks[0], (S, FC1), lim1, jnp.bfloat16)
    w2s = _uniform(ks[1], (FC1, FC2), lim2, jnp.bfloat16)
    w2a = _uniform(ks[2], (A, FC2), lim2, jnp.bfloat16)
    w3 = _uniform(ks[3], (FC2, FC3), lim3)
    w4 = _uniform(ks[4], (FC3, FC4), lim4)
    w5t = _uniform(ks[5], (FC5, FC4), 3e-3)

    b1 = _uniform(ks[6], (FC1,), 1.0 / np.sqrt(S))
    b2 = _uniform(ks[7], (FC2,), 1.0 / np.sqrt(FC1 + A))
    b3 = _uniform(ks[8], (FC3,), 1.0 / np.sqrt(FC2))
    b4 = _uniform(ks[9], (FC4,), 1.0 / np.sqrt(FC3))
    b5 = _uniform(ks[10], (FC5,), 1.0 / np.sqrt(FC4))

    # Zero-row padding over the fused [S+A] input axis: slice/concat-free
    # fc1 and fc2 inside the kernel with identical math.
    w1p = jnp.zeros((S + A, FC1), jnp.bfloat16).at[:S].set(w1)
    w2ap = jnp.zeros((S + A, FC2), jnp.bfloat16).at[S:].set(w2a)

    bias = jnp.zeros((1, BIAS_TOTAL), jnp.float32)
    bias = bias.at[0, B1_OFF:B1_OFF + FC1].set(b1)
    bias = bias.at[0, B2_OFF:B2_OFF + FC2].set(b2)
    bias = bias.at[0, B3_OFF:B3_OFF + FC3].set(b3)
    bias = bias.at[0, B4_OFF:B4_OFF + FC4].set(b4)
    bias = bias.at[0, B5_OFF:B5_OFF + FC5].set(b5)

    return {"w1p": w1p, "w2s": w2s, "w2ap": w2ap,
            "w3": w3, "w4": w4, "w5t": w5t, "bias": bias}


def critic_reference(state, action, p):
    """Pure-JAX reference of the torch forward, mirroring kernel dtypes."""
    f32 = lambda a: a.astype(jnp.float32)
    x = jnp.concatenate([state, action], axis=1)
    x = f32(x.astype(jnp.bfloat16))                 # kernel casts input to bf16
    b = p["bias"][0]
    b1 = b[B1_OFF:B1_OFF + FC1]
    b2 = b[B2_OFF:B2_OFF + FC2]
    b3 = b[B3_OFF:B3_OFF + FC3]
    b4 = b[B4_OFF:B4_OFF + FC4]
    b5 = b[B5_OFF:B5_OFF + FC5]
    h1 = jax.nn.relu(x @ f32(p["w1p"]) + b1)
    h1 = f32(h1.astype(jnp.bfloat16))               # kernel keeps fc1 act bf16
    h2 = jax.nn.relu(h1 @ f32(p["w2s"]) + x @ f32(p["w2ap"]) + b2)
    h3 = jax.nn.relu(h2 @ p["w3"] + b3)
    h4 = jax.nn.relu(h3 @ p["w4"] + b4)
    return h4 @ p["w5t"].T + b5


if __name__ == "__main__":
    batch, state_size, action_size = 8, 33, 4

    key = jax.random.PRNGKey(0)
    k_state, k_action, k_params = jax.random.split(key, 3)

    state = jax.random.normal(k_state, (batch, state_size), jnp.float32)
    action = jax.random.normal(k_action, (batch, action_size), jnp.float32)
    params = init_params(k_params, state_size, action_size)

    out = critic_forward(state, action, params)
    out = jax.block_until_ready(out)
    assert out.shape == (batch, 1)

    ref = critic_reference(state, action, params)
    np.testing.assert_allclose(np.asarray(out), np.asarray(ref),
                               rtol=2e-2, atol=2e-2)
    print("KERNEL_OK")
</pallas_src>

<mosaic_0001>
module attributes {stable_mosaic.version = 11 : i64} {
  func.func @_critic_kernel(%arg0: i32, %arg1: memref<16x37xf32, #tpu.memory_space<vmem>>, %arg2: memref<37x512xbf16, #tpu.memory_space<vmem>>, %arg3: memref<512x256xbf16, #tpu.memory_space<vmem>>, %arg4: memref<37x256xbf16, #tpu.memory_space<vmem>>, %arg5: memref<256x64xf32, #tpu.memory_space<vmem>>, %arg6: memref<64x16xf32, #tpu.memory_space<vmem>>, %arg7: memref<1x16xf32, #tpu.memory_space<vmem>>, %arg8: memref<1x1152xf32, #tpu.memory_space<vmem>>, %arg9: memref<1x16xf32, #tpu.memory_space<vmem>>) attributes {dimension_semantics = [#tpu.dimension_semantics<parallel>], iteration_bounds = array<i64: 1>, scalar_prefetch = 0 : i64, scratch_operands = 0 : i64, tpu.core_type = #tpu.core_type<tc>, window_params = [{transform_indices = @transform_0, window_bounds = array<i64: 16, 37>}, {pipeline_mode = #tpu.pipeline_mode<synchronous>, transform_indices = @transform_1, window_bounds = array<i64: 37, 512>}, {pipeline_mode = #tpu.pipeline_mode<synchronous>, transform_indices = @transform_2, window_bounds = array<i64: 512, 256>}, {pipeline_mode = #tpu.pipeline_mode<synchronous>, transform_indices = @transform_3, window_bounds = array<i64: 37, 256>}, {pipeline_mode = #tpu.pipeline_mode<synchronous>, transform_indices = @transform_4, window_bounds = array<i64: 256, 64>}, {pipeline_mode = #tpu.pipeline_mode<synchronous>, transform_indices = @transform_5, window_bounds = array<i64: 64, 16>}, {pipeline_mode = #tpu.pipeline_mode<synchronous>, transform_indices = @transform_6, window_bounds = array<i64: 1, 16>}, {pipeline_mode = #tpu.pipeline_mode<synchronous>, transform_indices = @transform_7, window_bounds = array<i64: 1, 1152>}, {transform_indices = @transform_8, window_bounds = array<i64: 1, 16>}]} {
    %c0 = arith.constant 0 : index
    %c0_0 = arith.constant 0 : index
    %0 = vector.load %arg1[%c0, %c0_0] : memref<16x37xf32, #tpu.memory_space<vmem>>, vector<16x37xf32>
    %1 = arith.truncf %0 : vector<16x37xf32> to vector<16x37xbf16>
    %c0_1 = arith.constant 0 : index
    %c0_2 = arith.constant 0 : index
    %2 = vector.load %arg8[%c0_1, %c0_2] : memref<1x1152xf32, #tpu.memory_space<vmem>>, vector<1x512xf32>
    %c0_3 = arith.constant 0 : index
    %c512 = arith.constant 512 : index
    %3 = vector.load %arg8[%c0_3, %c512] : memref<1x1152xf32, #tpu.memory_space<vmem>>, vector<1x256xf32>
    %c0_4 = arith.constant 0 : index
    %c768 = arith.constant 768 : index
    %4 = vector.load %arg8[%c0_4, %c768] : memref<1x1152xf32, #tpu.memory_space<vmem>>, vector<1x64xf32>
    %c0_5 = arith.constant 0 : index
    %c896 = arith.constant 896 : index
    %5 = vector.load %arg8[%c0_5, %c896] : memref<1x1152xf32, #tpu.memory_space<vmem>>, vector<1x16xf32>
    %c0_6 = arith.constant 0 : index
    %c1024 = arith.constant 1024 : index
    %6 = vector.load %arg8[%c0_6, %c1024] : memref<1x1152xf32, #tpu.memory_space<vmem>>, vector<1x1xf32>
    %c0_7 = arith.constant 0 : index
    %c0_8 = arith.constant 0 : index
    %7 = vector.load %arg2[%c0_7, %c0_8] : memref<37x512xbf16, #tpu.memory_space<vmem>>, vector<37x512xbf16>
    %cst = arith.constant dense<0.000000e+00> : vector<16x512xf32>
    %8 = tpu.matmul %1, %7, %cst {dimension_numbers = #tpu.dot_dimension_numbers<[1], [0], [0], [1], [0, 0, 1, 1], [], []>} : vector<16x37xbf16>, vector<37x512xbf16>, vector<16x512xf32> -> vector<16x512xf32>
    %9 = vector.broadcast %2 : vector<1x512xf32> to vector<16x512xf32>
    %10 = arith.addf %8, %9 : vector<16x512xf32>
    %cst_9 = arith.constant 0.000000e+00 : f32
    %11 = vector.broadcast %cst_9 : f32 to vector<16x512xf32>
    %12 = arith.maximumf %10, %11 : vector<16x512xf32>
    %13 = arith.truncf %12 : vector<16x512xf32> to vector<16x512xbf16>
    %c0_10 = arith.constant 0 : index
    %c0_11 = arith.constant 0 : index
    %14 = vector.load %arg3[%c0_10, %c0_11] : memref<512x256xbf16, #tpu.memory_space<vmem>>, vector<512x256xbf16>
    %cst_12 = arith.constant dense<0.000000e+00> : vector<16x256xf32>
    %15 = tpu.matmul %13, %14, %cst_12 {dimension_numbers = #tpu.dot_dimension_numbers<[1], [0], [0], [1], [0, 0, 1, 1], [], []>} : vector<16x512xbf16>, vector<512x256xbf16>, vector<16x256xf32> -> vector<16x256xf32>
    %c0_13 = arith.constant 0 : index
    %c0_14 = arith.constant 0 : index
    %16 = vector.load %arg4[%c0_13, %c0_14] : memref<37x256xbf16, #tpu.memory_space<vmem>>, vector<37x256xbf16>
    %cst_15 = arith.constant dense<0.000000e+00> : vector<16x256xf32>
    %17 = tpu.matmul %1, %16, %cst_15 {dimension_numbers = #tpu.dot_dimension_numbers<[1], [0], [0], [1], [0, 0, 1, 1], [], []>} : vector<16x37xbf16>, vector<37x256xbf16>, vector<16x256xf32> -> vector<16x256xf32>
    %18 = arith.addf %15, %17 : vector<16x256xf32>
    %19 = vector.broadcast %3 : vector<1x256xf32> to vector<16x256xf32>
    %20 = arith.addf %18, %19 : vector<16x256xf32>
    %cst_16 = arith.constant 0.000000e+00 : f32
    %21 = vector.broadcast %cst_16 : f32 to vector<16x256xf32>
    %22 = arith.maximumf %20, %21 : vector<16x256xf32>
    %c0_17 = arith.constant 0 : index
    %c0_18 = arith.constant 0 : index
    %23 = vector.load %arg5[%c0_17, %c0_18] : memref<256x64xf32, #tpu.memory_space<vmem>>, vector<256x64xf32>
    %cst_19 = arith.constant dense<0.000000e+00> : vector<16x64xf32>
    %24 = tpu.matmul %22, %23, %cst_19 {dimension_numbers = #tpu.dot_dimension_numbers<[1], [0], [0], [1], [0, 0, 1, 1], [], []>} : vector<16x256xf32>, vector<256x64xf32>, vector<16x64xf32> -> vector<16x64xf32>
    %25 = vector.broadcast %4 : vector<1x64xf32> to vector<16x64xf32>
    %26 = arith.addf %24, %25 : vector<16x64xf32>
    %cst_20 = arith.constant 0.000000e+00 : f32
    %27 = vector.broadcast %cst_20 : f32 to vector<16x64xf32>
    %28 = arith.maximumf %26, %27 : vector<16x64xf32>
    %c0_21 = arith.constant 0 : index
    %c0_22 = arith.constant 0 : index
    %29 = vector.load %arg6[%c0_21, %c0_22] : memref<64x16xf32, #tpu.memory_space<vmem>>, vector<64x16xf32>
    %cst_23 = arith.constant dense<0.000000e+00> : vector<16x16xf32>
    %30 = tpu.matmul %28, %29, %cst_23 {dimension_numbers = #tpu.dot_dimension_numbers<[1], [0], [0], [1], [0, 0, 1, 1], [], []>} : vector<16x64xf32>, vector<64x16xf32>, vector<16x16xf32> -> vector<16x16xf32>
    %31 = vector.broadcast %5 : vector<1x16xf32> to vector<16x16xf32>
    %32 = arith.addf %30, %31 : vector<16x16xf32>
    %cst_24 = arith.constant 0.000000e+00 : f32
    %33 = vector.broadcast %cst_24 : f32 to vector<16x16xf32>
    %34 = arith.maximumf %32, %33 : vector<16x16xf32>
    %c0_25 = arith.constant 0 : index
    %c0_26 = arith.constant 0 : index
    %35 = vector.load %arg7[%c0_25, %c0_26] : memref<1x16xf32, #tpu.memory_space<vmem>>, vector<1x16xf32>
    "tpu.trace_start"() <{level = 10 : i32, message = "ok,bk->ob"}> : () -> ()
    %cst_27 = arith.constant dense<0.000000e+00> : vector<1x16xf32>
    %36 = tpu.matmul %35, %34, %cst_27 {dimension_numbers = #tpu.dot_dimension_numbers<[1], [1], [0], [0], [0, 0, 1, 0], [], []>} : vector<1x16xf32>, vector<16x16xf32>, vector<1x16xf32> -> vector<1x16xf32>
    "tpu.trace_stop"() : () -> ()
    %37 = vector.broadcast %6 : vector<1x1xf32> to vector<1x16xf32>
    %38 = arith.addf %36, %37 : vector<1x16xf32>
    %c0_28 = arith.constant 0 : index
    %c0_29 = arith.constant 0 : index
    %39 = vector.load %arg9[%c0_28, %c0_29] : memref<1x16xf32, #tpu.memory_space<vmem>>, vector<1x16xf32>
    tpu.vector_store %arg9[%c0_28, %c0_29], %38 {strides = array<i32>} : memref<1x16xf32, #tpu.memory_space<vmem>>, vector<1x16xf32>,
    return
  }
  func.func @transform_0(%arg0: i32) -> (i32, i32) {
    %c0_i32 = arith.constant 0 : i32
    %c0_i32_0 = arith.constant 0 : i32
    return %arg0, %c0_i32 : i32, i32
  }
  func.func @transform_1(%arg0: i32) -> (i32, i32) {
    %c0_i32 = arith.constant 0 : i32
    %c0_i32_0 = arith.constant 0 : i32
    %c0_i32_1 = arith.constant 0 : i32
    return %c0_i32, %c0_i32_0 : i32, i32
  }
  func.func @transform_2(%arg0: i32) -> (i32, i32) {
    %c0_i32 = arith.constant 0 : i32
    %c0_i32_0 = arith.constant 0 : i32
    %c0_i32_1 = arith.constant 0 : i32
    return %c0_i32, %c0_i32_0 : i32, i32
  }
  func.func @transform_3(%arg0: i32) -> (i32, i32) {
    %c0_i32 = arith.constant 0 : i32
    %c0_i32_0 = arith.constant 0 : i32
    %c0_i32_1 = arith.constant 0 : i32
    return %c0_i32, %c0_i32_0 : i32, i32
  }
  func.func @transform_4(%arg0: i32) -> (i32, i32) {
    %c0_i32 = arith.constant 0 : i32
    %c0_i32_0 = arith.constant 0 : i32
    %c0_i32_1 = arith.constant 0 : i32
    return %c0_i32, %c0_i32_0 : i32, i32
  }
  func.func @transform_5(%arg0: i32) -> (i32, i32) {
    %c0_i32 = arith.constant 0 : i32
    %c0_i32_0 = arith.constant 0 : i32
    %c0_i32_1 = arith.constant 0 : i32
    return %c0_i32, %c0_i32_0 : i32, i32
  }
  func.func @transform_6(%arg0: i32) -> (i32, i32) {
    %c0_i32 = arith.constant 0 : i32
    %c0_i32_0 = arith.constant 0 : i32
    %c0_i32_1 = arith.constant 0 : i32
    return %c0_i32, %c0_i32_0 : i32, i32
  }
  func.func @transform_7(%arg0: i32) -> (i32, i32) {
    %c0_i32 = arith.constant 0 : i32
    %c0_i32_0 = arith.constant 0 : i32
    %c0_i32_1 = arith.constant 0 : i32
    return %c0_i32, %c0_i32_0 : i32, i32
  }
  func.func @transform_8(%arg0: i32) -> (i32, i32) {
    %c0_i32 = arith.constant 0 : i32
    %c0_i32_0 = arith.constant 0 : i32
    return %c0_i32, %arg0 : i32, i32
  }
}

</mosaic_0001>

<llo_original>
// kernel: tpu_custom_call.1
$region0: #{tpu_custom_call.1}
  #allocation0 [shape = 'u32[]', space=smem, size = 0x4, offset = 0x4, fixed_abs, tag = 'smem constant byte address 0x4 - core index']
  #allocation1 [shape = 'u32[144,128]{1,0:T(1,128)}', space=vmem, size = 0x12000, scoped, tag = 'internal scratch']
  %s0 = inlined_call_operand.vmem [shape: f32[16,37], index: 0, kind: input, shape index: {}]
  %s1 = inlined_call_operand.vmem [shape: bf16[37,512], index: 1, kind: input, shape index: {}]
  %s2 = inlined_call_operand.hbm [shape: bf16[512,256], index: 2, kind: input, shape index: {}]
  %s3 = inlined_call_operand.vmem [shape: bf16[37,256], index: 3, kind: input, shape index: {}]
  %s4 = inlined_call_operand.vmem [shape: f32[256,64], index: 4, kind: input, shape index: {}]
  %s5 = inlined_call_operand.vmem [shape: f32[64,16], index: 5, kind: input, shape index: {}]
  %s6 = inlined_call_operand.vmem [shape: f32[1,16], index: 6, kind: input, shape index: {}]
  %s7 = inlined_call_operand.vmem [shape: f32[1,1152], index: 7, kind: input, shape index: {}]
  %s8 = inlined_call_operand.hbm [shape: f32[1,16], index: 8, kind: output, shape index: {}]
  %s9 = sld [smem:[#allocation0]]
  $region46: #{tpu_custom_call.1} parent=0
    _
  %s11 = ssub.s32 1, %s9
  %s12 = scalar_select 0, %s11, %s9
  $region1: #{tpu_custom_call.1} parent=0
    #allocation2 [shape = 'u8[262144]{0}', space=vmem, size = 0x40000, scoped, tag = 'input window, operand 2, single buffered']
    #allocation3 [shape = 's32[1]{0}', space=sflag, size = 0x4, scoped, tag = 'scoped memory for tpu_custom_call.1']
    #allocation4 [shape = 's32[1]{0}', space=sflag, size = 0x4, scoped, tag = 'scoped memory for tpu_custom_call.1']
    #allocation5 [shape = 'u8[512]{0}', space=vmem, size = 0x400, scoped, tag = 'output window, operand 0, single buffered']
    %13 = vsyncpa [#allocation3], 0
    %14 = vsyncpa [#allocation4], 0
    // Predicated region
    $region2: #{tpu_custom_call.1} parent=1 // pred_check
      _
    $region3: #{tpu_custom_call.1} parent=1 // pred_check_branch
      %16 = sbr.rel (0) target = $region5
    $region4: #{tpu_custom_call.1} parent=1 // pred_region
      _
    $region5: #{tpu_custom_call.1} parent=1 // pred_fallthru
      _
    // Predicated region
    $region6: #{tpu_custom_call.1} parent=1 // pred_check
      _
    $region7: #{tpu_custom_call.1} parent=1 // pred_check_branch
      %18 = sbr.rel (0) target = $region9
    $region8: #{tpu_custom_call.1} parent=1 // pred_region
      _
    $region9: #{tpu_custom_call.1} parent=1 // pred_fallthru
      _
    // Predicated region
    $region10: #{tpu_custom_call.1} parent=1 // pred_check
      _
    $region11: #{tpu_custom_call.1} parent=1 // pred_check_branch
      %20 = sbr.rel (0) target = $region13
    $region12: #{tpu_custom_call.1} parent=1 // pred_region
      %s22 = ssub.s32 8192, 8192
      %23 = vsyncadd [#allocation3], %s22
      %s24 = sshll.u32 [#allocation2], 4
      %s25 = int_to_ptr.vmem [resolvable:$true] %s24
      %30 = dma.hbm_to_vmem [thread:$0]  %s2, 8192, %s25, [#allocation3], 128, 128, 8
    $region13: #{tpu_custom_call.1} parent=1 // pred_fallthru
      _
    // Predicated region
    $region14: #{tpu_custom_call.1} parent=1 // pred_check
      _
    $region15: #{tpu_custom_call.1} parent=1 // pred_check_branch
      %32 = sbr.rel (0) target = $region17
    $region16: #{tpu_custom_call.1} parent=1 // pred_region
      _
    $region17: #{tpu_custom_call.1} parent=1 // pred_fallthru
      _
    // Predicated region
    $region18: #{tpu_custom_call.1} parent=1 // pred_check
      _
    $region19: #{tpu_custom_call.1} parent=1 // pred_check_branch
      %34 = sbr.rel (0) target = $region21
    $region20: #{tpu_custom_call.1} parent=1 // pred_region
      _
    $region21: #{tpu_custom_call.1} parent=1 // pred_fallthru
      _
    // Predicated region
    $region22: #{tpu_custom_call.1} parent=1 // pred_check
      _
    $region23: #{tpu_custom_call.1} parent=1 // pred_check_branch
      %36 = sbr.rel (0) target = $region25
    $region24: #{tpu_custom_call.1} parent=1 // pred_region
      _
    $region25: #{tpu_custom_call.1} parent=1 // pred_fallthru
      _
    // Predicated region
    $region26: #{tpu_custom_call.1} parent=1 // pred_check
      _
    $region27: #{tpu_custom_call.1} parent=1 // pred_check_branch
      %38 = sbr.rel (0) target = $region29
    $region28: #{tpu_custom_call.1} parent=1 // pred_region
      _
    $region29: #{tpu_custom_call.1} parent=1 // pred_fallthru
      _
    // Predicated region
    $region30: #{tpu_custom_call.1} parent=1 // pred_check
      _
    $region31: #{tpu_custom_call.1} parent=1 // pred_check_branch
      %40 = sbr.rel (0) target = $region33
    $region32: #{tpu_custom_call.1} parent=1 // pred_region
      _
    $region33: #{tpu_custom_call.1} parent=1 // pred_fallthru
      _
    // Predicated region
    $region34: #{tpu_custom_call.1} parent=1 // pred_check
      _
    $region35: #{tpu_custom_call.1} parent=1 // pred_check_branch
      %42 = sbr.rel (0) target = $region37
    $region36: #{tpu_custom_call.1} parent=1 // pred_region
      %43 = dma.done [#allocation3], 8192
    $region37: #{tpu_custom_call.1} parent=1 // pred_fallthru
      _
    %v45 = vld [vmem:[%s0] sm:$0xff]
    %v46 = vld [vmem:[%s0 + $0x8] sm:$0xff]
    %v47 = vpack.c.bf16 %v46, %v45
    %v48 = vld [vmem:[%s7] sm:$0xf]
    %v49 = vld [vmem:[%s7 + $0x4] sm:$0x3]
    %v50 = vld [vmem:[%s7 + $0x6] sm:$0x1]
    %v51 = vld [vmem:[%s7 + $0x7] sm:$0x1]
    %v52 = vld [vmem:[%s7 + $0x8] sm:$0x1]
    %v53 = vld [vmem:[%s1] sm:$0xff]
    %v54 = vld [vmem:[%s1 + $0x8] sm:$0xff]
    %v55 = vld [vmem:[%s1 + $0x10] sm:$0xff]
    %v56 = vld [vmem:[%s1 + $0x18] sm:$0xff]
    %v57 = vld [vmem:[%s1 + $0x20] sm:$0xff]
    %v58 = vld [vmem:[%s1 + $0x28] sm:$0xff]
    %v59 = vld [vmem:[%s1 + $0x30] sm:$0xff]
    %v60 = vld [vmem:[%s1 + $0x38] sm:$0xff]
    %v61 = vld [vmem:[%s1 + $0x40] sm:$0x77]
    %v62 = vld [vmem:[%s1 + $0x48] sm:$0x77]
    %v64 = vlaneseq
    %v65 = vshrl.u32 %v64, 7
    %v66 = vsub.s32 0, %v65
    %v67 = vrot.slane %v48, %v66
    %v68 = vlaneseq
    %v69 = vshrl.u32 %v68, 7
    %v70 = vsub.s32 1, %v69
    %v71 = vrot.slane %v48, %v70
    %v72 = vlaneseq
    %v73 = vshrl.u32 %v72, 7
    %v74 = vsub.s32 2, %v73
    %v75 = vrot.slane %v48, %v74
    %v76 = vlaneseq
    %v77 = vshrl.u32 %v76, 7
    %v78 = vsub.s32 3, %v77
    %v79 = vrot.slane %v48, %v78
    %v94 = vunpack.c.l.b16 %v53
    %v95 = vunpack.c.h.b16 %v53
    %v96 = vunpack.c.l.b16 %v54
    %v97 = vunpack.c.h.b16 %v54
    %v98 = vunpack.c.l.b16 %v55
    %v99 = vunpack.c.h.b16 %v55
    %v100 = vunpack.c.l.b16 %v56
    %v101 = vunpack.c.h.b16 %v56
    %v102 = vunpack.c.l.b16 %v57
    %v103 = vunpack.c.h.b16 %v57
    %v104 = vunpack.c.l.b16 %v58
    %v105 = vunpack.c.h.b16 %v58
    %v106 = vunpack.c.l.b16 %v59
    %v107 = vunpack.c.h.b16 %v59
    %v108 = vunpack.c.l.b16 %v60
    %v109 = vunpack.c.h.b16 %v60
    %v110 = vunpack.c.l.b16 %v61
    %v111 = vunpack.c.h.b16 %v61
    %v112 = vunpack.c.l.b16 %v62
    %v113 = vunpack.c.h.b16 %v62
    %v114 = vpack.c.b16 %v98, %v94
    %v115 = vpack.c.b16 %v99, %v95
    %v116 = vpack.c.b16 %v100, %v96
    %v117 = vpack.c.b16 %v101, %v97
    %v118 = vpack.c.b16 %v106, %v102
    %v119 = vpack.c.b16 %v107, %v103
    %v120 = vpack.c.b16 %v108, %v104
    %v121 = vpack.c.b16 %v109, %v105
    %v122 = vpack.c.b16 %v110, %v110
    %v123 = vpack.c.b16 %v111, %v111
    %v124 = vpack.c.b16 %v112, %v112
    %v125 = vpack.c.b16 %v113, %v113
    %vm134 = vcmask 302080
    %v136 = vsel %vm134, %v47, 0
    %vm138 = vcmask 1041408
    %vm139 = vcmask 1042432
    %v140 = vsel %vm138, 4294967295, 65535
    %v141 = vsel %vm139, %v140, 0
    %v143 = vand.u32 %v122, %v141
    %v146 = vand.u32 %v123, %v141
    %v149 = vand.u32 %v124, %v141
    %v152 = vand.u32 %v125, %v141
    %154 = vmatprep.subr.bf16.mxu0 0
    %155 = vmatpush1.bf16.msra.mxu0 0
    %156 = vmatprep.subr.bf16.mxu0 0
    %157 = vmatpush1.bf16.msra.mxu0 0
    %158 = vmatprep.subr.bf16.mxu0 0
    %159 = vmatpush1.bf16.msra.mxu0 0
    %160 = vmatprep.subr.bf16.mxu0 0
    %161 = vmatpush1.bf16.msra.mxu0 0
    %162 = vmatprep.subr.bf16.mxu0 0
    %163 = vmatpush1.bf16.msra.mxu0 0
    %164 = vmatprep.subr.bf16.mxu0 %v146
    %165 = vmatpush1.bf16.msra.mxu0 %v143
    %166 = vmatprep.subr.bf16.mxu0 %v119
    %167 = vmatpush1.bf16.msra.mxu0 %v118
    %168 = vmatprep.subr.bf16.mxu0 %v115
    %169 = vmatpush1.bf16.msra.mxu0 %v114
    %170 = vmatprep.subr.bf16.mxu0 0
    %171 = vmatpush2.bf16.msra.mxu0 0
    %172 = vmatprep.subr.bf16.mxu0 0
    %173 = vmatpush2.bf16.msra.mxu0 0
    %174 = vmatprep.subr.bf16.mxu0 0
    %175 = vmatpush2.bf16.msra.mxu0 0
    %176 = vmatprep.subr.bf16.mxu0 0
    %177 = vmatpush2.bf16.msra.mxu0 0
    %178 = vmatprep.subr.bf16.mxu0 0
    %179 = vmatpush2.bf16.msra.mxu0 0
    %180 = vmatprep.subr.bf16.mxu0 0
    %181 = vmatpush2.bf16.msra.mxu0 0
    %182 = vmatprep.subr.bf16.mxu0 0
    %183 = vmatpush2.bf16.msra.mxu0 0
    %184 = vmatprep.subr.bf16.mxu0 0
    %185 = vmatpush2.bf16.msra.mxu0 0
    %186 = vmatprep.mubr.bf16.mxu0 0
    %187 = vmatmul.mubr.bf16.gmra.mxu0 %v136
    %v188 = vpop.f32.mrf.mxu0
    %v189 = vadd.f32 %v67, %v188
    %v190 = vpop.f32.mrf.mxu0
    %v191 = vadd.f32 %v71, %v190
    %v192 = vpop.f32.mrf.mxu0
    %v193 = vadd.f32 %v67, %v192
    %v194 = vpop.f32.mrf.mxu0
    %v195 = vadd.f32 %v71, %v194
    %196 = vdwg.mxu0
    %197 = vmatprep.subr.bf16.mxu0 0
    %198 = vmatpush1.bf16.msra.mxu0 0
    %199 = vmatprep.subr.bf16.mxu0 0
    %200 = vmatpush1.bf16.msra.mxu0 0
    %201 = vmatprep.subr.bf16.mxu0 0
    %202 = vmatpush1.bf16.msra.mxu0 0
    %203 = vmatprep.subr.bf16.mxu0 0
    %204 = vmatpush1.bf16.msra.mxu0 0
    %205 = vmatprep.subr.bf16.mxu0 0
    %206 = vmatpush1.bf16.msra.mxu0 0
    %207 = vmatprep.subr.bf16.mxu0 %v152
    %208 = vmatpush1.bf16.msra.mxu0 %v149
    %209 = vmatprep.subr.bf16.mxu0 %v121
    %210 = vmatpush1.bf16.msra.mxu0 %v120
    %211 = vmatprep.subr.bf16.mxu0 %v117
    %212 = vmatpush1.bf16.msra.mxu0 %v116
    %213 = vmatprep.subr.bf16.mxu0 0
    %214 = vmatpush2.bf16.msra.mxu0 0
    %215 = vmatprep.subr.bf16.mxu0 0
    %216 = vmatpush2.bf16.msra.mxu0 0
    %217 = vmatprep.subr.bf16.mxu0 0
    %218 = vmatpush2.bf16.msra.mxu0 0
    %219 = vmatprep.subr.bf16.mxu0 0
    %220 = vmatpush2.bf16.msra.mxu0 0
    %221 = vmatprep.subr.bf16.mxu0 0
    %222 = vmatpush2.bf16.msra.mxu0 0
    %223 = vmatprep.subr.bf16.mxu0 0
    %224 = vmatpush2.bf16.msra.mxu0 0
    %225 = vmatprep.subr.bf16.mxu0 0
    %226 = vmatpush2.bf16.msra.mxu0 0
    %227 = vmatprep.subr.bf16.mxu0 0
    %228 = vmatpush2.bf16.msra.mxu0 0
    %229 = vmatprep.mubr.bf16.mxu0 0
    %230 = vmatmul.mubr.bf16.gmra.mxu0 %v136
    %v231 = vpop.f32.mrf.mxu0
    %v232 = vadd.f32 %v75, %v231
    %v233 = vpop.f32.mrf.mxu0
    %v234 = vadd.f32 %v79, %v233
    %v235 = vpop.f32.mrf.mxu0
    %v236 = vadd.f32 %v75, %v235
    %v237 = vpop.f32.mrf.mxu0
    %v238 = vadd.f32 %v79, %v237
    %239 = vdwg.mxu0
    %v240 = vmax.f32 %v189, 0.0
    %v241 = vmax.f32 %v191, 0.0
    %v242 = vmax.f32 %v232, 0.0
    %v243 = vmax.f32 %v234, 0.0
    %v244 = vmax.f32 %v193, 0.0
    %v245 = vmax.f32 %v195, 0.0
    %v246 = vmax.f32 %v236, 0.0
    %v247 = vmax.f32 %v238, 0.0
    %v248 = vpack.c.bf16 %v244, %v240
    %v249 = vpack.c.bf16 %v245, %v241
    %v250 = vpack.c.bf16 %v246, %v242
    %v251 = vpack.c.bf16 %v247, %v243
    %v252 = vld [vmem:[#allocation2] sm:$0xff]
    %v253 = vld [vmem:[#allocation2 + $0x8] sm:$0xff]
    %v254 = vld [vmem:[#allocation2 + $0x10] sm:$0xff]
    %v255 = vld [vmem:[#allocation2 + $0x18] sm:$0xff]
    %v256 = vld [vmem:[#allocation2 + $0x20] sm:$0xff]
    %v257 = vld [vmem:[#allocation2 + $0x28] sm:$0xff]
    %v258 = vld [vmem:[#allocation2 + $0x30] sm:$0xff]
    %v259 = vld [vmem:[#allocation2 + $0x38] sm:$0xff]
    %v260 = vld [vmem:[#allocation2 + $0x40] sm:$0xff]
    %v261 = vld [vmem:[#allocation2 + $0x48] sm:$0xff]
    %v262 = vld [vmem:[#allocation2 + $0x50] sm:$0xff]
    %v263 = vld [vmem:[#allocation2 + $0x58] sm:$0xff]
    %v264 = vld [vmem:[#allocation2 + $0x60] sm:$0xff]
    %v265 = vld [vmem:[#allocation2 + $0x68] sm:$0xff]
    %v266 = vld [vmem:[#allocation2 + $0x70] sm:$0xff]
    %v267 = vld [vmem:[#allocation2 + $0x78] sm:$0xff]
    %v268 = vld [vmem:[#allocation2 + $0x80] sm:$0xff]
    %v269 = vld [vmem:[#allocation2 + $0x88] sm:$0xff]
    %v270 = vld [vmem:[#allocation2 + $0x90] sm:$0xff]
    %v271 = vld [vmem:[#allocation2 + $0x98] sm:$0xff]
    %v272 = vld [vmem:[#allocation2 + $0xa0] sm:$0xff]
    %v273 = vld [vmem:[#allocation2 + $0xa8] sm:$0xff]
    %v274 = vld [vmem:[#allocation2 + $0xb0] sm:$0xff]
    %v275 = vld [vmem:[#allocation2 + $0xb8] sm:$0xff]
    %v276 = vld [vmem:[#allocation2 + $0xc0] sm:$0xff]
    %v277 = vld [vmem:[#allocation2 + $0xc8] sm:$0xff]
    %v278 = vld [vmem:[#allocation2 + $0xd0] sm:$0xff]
    %v279 = vld [vmem:[#allocation2 + $0xd8] sm:$0xff]
    %v280 = vld [vmem:[#allocation2 + $0xe0] sm:$0xff]
    %v281 = vld [vmem:[#allocation2 + $0xe8] sm:$0xff]
    %v282 = vld [vmem:[#allocation2 + $0xf0] sm:$0xff]
    %v283 = vld [vmem:[#allocation2 + $0xf8] sm:$0xff]
    %v284 = vld [vmem:[#allocation2 + $0x100] sm:$0xff]
    %v285 = vld [vmem:[#allocation2 + $0x108] sm:$0xff]
    %v286 = vld [vmem:[#allocation2 + $0x110] sm:$0xff]
    %v287 = vld [vmem:[#allocation2 + $0x118] sm:$0xff]
    %v288 = vld [vmem:[#allocation2 + $0x120] sm:$0xff]
    %v289 = vld [vmem:[#allocation2 + $0x128] sm:$0xff]
    %v290 = vld [vmem:[#allocation2 + $0x130] sm:$0xff]
    %v291 = vld [vmem:[#allocation2 + $0x138] sm:$0xff]
    %v292 = vld [vmem:[#allocation2 + $0x140] sm:$0xff]
    %v293 = vld [vmem:[#allocation2 + $0x148] sm:$0xff]
    %v294 = vld [vmem:[#allocation2 + $0x150] sm:$0xff]
    %v295 = vld [vmem:[#allocation2 + $0x158] sm:$0xff]
    %v296 = vld [vmem:[#allocation2 + $0x160] sm:$0xff]
    %v297 = vld [vmem:[#allocation2 + $0x168] sm:$0xff]
    %v298 = vld [vmem:[#allocation2 + $0x170] sm:$0xff]
    %v299 = vld [vmem:[#allocation2 + $0x178] sm:$0xff]
    %v300 = vld [vmem:[#allocation2 + $0x180] sm:$0xff]
    %v301 = vld [vmem:[#allocation2 + $0x188] sm:$0xff]
    %v302 = vld [vmem:[#allocation2 + $0x190] sm:$0xff]
    %v303 = vld [vmem:[#allocation2 + $0x198] sm:$0xff]
    %v304 = vld [vmem:[#allocation2 + $0x1a0] sm:$0xff]
    %v305 = vld [vmem:[#allocation2 + $0x1a8] sm:$0xff]
    %v306 = vld [vmem:[#allocation2 + $0x1b0] sm:$0xff]
    %v307 = vld [vmem:[#allocation2 + $0x1b8] sm:$0xff]
    %v308 = vld [vmem:[#allocation2 + $0x1c0] sm:$0xff]
    %v309 = vld [vmem:[#allocation2 + $0x1c8] sm:$0xff]
    %v310 = vld [vmem:[#allocation2 + $0x1d0] sm:$0xff]
    %v311 = vld [vmem:[#allocation2 + $0x1d8] sm:$0xff]
    %v312 = vld [vmem:[#allocation2 + $0x1e0] sm:$0xff]
    %v313 = vld [vmem:[#allocation2 + $0x1e8] sm:$0xff]
    %v314 = vld [vmem:[#allocation2 + $0x1f0] sm:$0xff]
    %v315 = vld [vmem:[#allocation2 + $0x1f8] sm:$0xff]
    %v316 = vld [vmem:[%s3] sm:$0xff]
    %v317 = vld [vmem:[%s3 + $0x8] sm:$0xff]
    %v318 = vld [vmem:[%s3 + $0x10] sm:$0xff]
    %v319 = vld [vmem:[%s3 + $0x18] sm:$0xff]
    %v320 = vld [vmem:[%s3 + $0x20] sm:$0x77]
    %v326 = vunpack.c.l.b16 %v316
    %v327 = vunpack.c.h.b16 %v316
    %v328 = vunpack.c.l.b16 %v317
    %v329 = vunpack.c.h.b16 %v317
    %v330 = vunpack.c.l.b16 %v318
    %v331 = vunpack.c.h.b16 %v318
    %v332 = vunpack.c.l.b16 %v319
    %v333 = vunpack.c.h.b16 %v319
    %v334 = vunpack.c.l.b16 %v320
    %v335 = vunpack.c.h.b16 %v320
    %v336 = vpack.c.b16 %v328, %v326
    %v337 = vpack.c.b16 %v329, %v327
    %v338 = vpack.c.b16 %v332, %v330
    %v339 = vpack.c.b16 %v333, %v331
    %v340 = vpack.c.b16 %v334, %v334
    %v341 = vpack.c.b16 %v335, %v335
    %v347 = vand.u32 %v340, %v141
    %v350 = vand.u32 %v341, %v141
    %352 = vmatprep.subr.bf16.mxu0 0
    %353 = vmatpush1.bf16.msra.mxu0 0
    %354 = vmatprep.subr.bf16.mxu0 0
    %355 = vmatpush1.bf16.msra.mxu0 0
    %356 = vmatprep.subr.bf16.mxu0 0
    %357 = vmatpush1.bf16.msra.mxu0 0
    %358 = vmatprep.subr.bf16.mxu0 0
    %359 = vmatpush1.bf16.msra.mxu0 0
    %360 = vmatprep.subr.bf16.mxu0 0
    %361 = vmatpush1.bf16.msra.mxu0 0
    %362 = vmatprep.subr.bf16.mxu0 %v350
    %363 = vmatpush1.bf16.msra.mxu0 %v347
    %364 = vmatprep.subr.bf16.mxu0 %v339
    %365 = vmatpush1.bf16.msra.mxu0 %v338
    %366 = vmatprep.subr.bf16.mxu0 %v337
    %367 = vmatpush1.bf16.msra.mxu0 %v336
    %368 = vmatprep.subr.bf16.mxu0 0
    %369 = vmatpush2.bf16.msra.mxu0 0
    %370 = vmatprep.subr.bf16.mxu0 0
    %371 = vmatpush2.bf16.msra.mxu0 0
    %372 = vmatprep.subr.bf16.mxu0 0
    %373 = vmatpush2.bf16.msra.mxu0 0
    %374 = vmatprep.subr.bf16.mxu0 0
    %375 = vmatpush2.bf16.msra.mxu0 0
    %376 = vmatprep.subr.bf16.mxu0 0
    %377 = vmatpush2.bf16.msra.mxu0 0
    %378 = vmatprep.subr.bf16.mxu0 0
    %379 = vmatpush2.bf16.msra.mxu0 0
    %380 = vmatprep.subr.bf16.mxu0 0
    %381 = vmatpush2.bf16.msra.mxu0 0
    %382 = vmatprep.subr.bf16.mxu0 0
    %383 = vmatpush2.bf16.msra.mxu0 0
    %384 = vmatprep.mubr.bf16.mxu0 0
    %385 = vmatmul.mubr.bf16.gmra.mxu0 %v136
    %v386 = vpop.f32.mrf.mxu0
    %v387 = vadd.f32 0.0, %v386
    %v388 = vpop.f32.mrf.mxu0
    %v389 = vadd.f32 0.0, %v388
    %v390 = vpop.f32.mrf.mxu0
    %v391 = vadd.f32 0.0, %v390
    %v392 = vpop.f32.mrf.mxu0
    %v393 = vadd.f32 0.0, %v392
    %394 = vdwg.mxu0
    %v459 = vunpack.c.l.b16 %v252
    %v460 = vunpack.c.h.b16 %v252
    %v461 = vunpack.c.l.b16 %v253
    %v462 = vunpack.c.h.b16 %v253
    %v463 = vunpack.c.l.b16 %v254
    %v464 = vunpack.c.h.b16 %v254
    %v465 = vunpack.c.l.b16 %v255
    %v466 = vunpack.c.h.b16 %v255
    %v467 = vunpack.c.l.b16 %v256
    %v468 = vunpack.c.h.b16 %v256
    %v469 = vunpack.c.l.b16 %v257
    %v470 = vunpack.c.h.b16 %v257
    %v471 = vunpack.c.l.b16 %v258
    %v472 = vunpack.c.h.b16 %v258
    %v473 = vunpack.c.l.b16 %v259
    %v474 = vunpack.c.h.b16 %v259
    %v475 = vunpack.c.l.b16 %v260
    %v476 = vunpack.c.h.b16 %v260
    %v477 = vunpack.c.l.b16 %v261
    %v478 = vunpack.c.h.b16 %v261
    %v479 = vunpack.c.l.b16 %v262
    %v480 = vunpack.c.h.b16 %v262
    %v481 = vunpack.c.l.b16 %v263
    %v482 = vunpack.c.h.b16 %v263
    %v483 = vunpack.c.l.b16 %v264
    %v484 = vunpack.c.h.b16 %v264
    %v485 = vunpack.c.l.b16 %v265
    %v486 = vunpack.c.h.b16 %v265
    %v487 = vunpack.c.l.b16 %v266
    %v488 = vunpack.c.h.b16 %v266
    %v489 = vunpack.c.l.b16 %v267
    %v490 = vunpack.c.h.b16 %v267
    %v491 = vunpack.c.l.b16 %v268
    %v492 = vunpack.c.h.b16 %v268
    %v493 = vunpack.c.l.b16 %v269
    %v494 = vunpack.c.h.b16 %v269
    %v495 = vunpack.c.l.b16 %v270
    %v496 = vunpack.c.h.b16 %v270
    %v497 = vunpack.c.l.b16 %v271
    %v498 = vunpack.c.h.b16 %v271
    %v499 = vunpack.c.l.b16 %v272
    %v500 = vunpack.c.h.b16 %v272
    %v501 = vunpack.c.l.b16 %v273
    %v502 = vunpack.c.h.b16 %v273
    %v503 = vunpack.c.l.b16 %v274
    %v504 = vunpack.c.h.b16 %v274
    %v505 = vunpack.c.l.b16 %v275
    %v506 = vunpack.c.h.b16 %v275
    %v507 = vunpack.c.l.b16 %v276
    %v508 = vunpack.c.h.b16 %v276
    %v509 = vunpack.c.l.b16 %v277
    %v510 = vunpack.c.h.b16 %v277
    %v511 = vunpack.c.l.b16 %v278
    %v512 = vunpack.c.h.b16 %v278
    %v513 = vunpack.c.l.b16 %v279
    %v514 = vunpack.c.h.b16 %v279
    %v515 = vunpack.c.l.b16 %v280
    %v516 = vunpack.c.h.b16 %v280
    %v517 = vunpack.c.l.b16 %v281
    %v518 = vunpack.c.h.b16 %v281
    %v519 = vunpack.c.l.b16 %v282
    %v520 = vunpack.c.h.b16 %v282
    %v521 = vunpack.c.l.b16 %v283
    %v522 = vunpack.c.h.b16 %v283
    %v523 = vunpack.c.l.b16 %v284
    %v524 = vunpack.c.h.b16 %v284
    %v525 = vunpack.c.l.b16 %v285
    %v526 = vunpack.c.h.b16 %v285
    %v527 = vunpack.c.l.b16 %v286
    %v528 = vunpack.c.h.b16 %v286
    %v529 = vunpack.c.l.b16 %v287
    %v530 = vunpack.c.h.b16 %v287
    %v531 = vunpack.c.l.b16 %v288
    %v532 = vunpack.c.h.b16 %v288
    %v533 = vunpack.c.l.b16 %v289
    %v534 = vunpack.c.h.b16 %v289
    %v535 = vunpack.c.l.b16 %v290
    %v536 = vunpack.c.h.b16 %v290
    %v537 = vunpack.c.l.b16 %v291
    %v538 = vunpack.c.h.b16 %v291
    %v539 = vunpack.c.l.b16 %v292
    %v540 = vunpack.c.h.b16 %v292
    %v541 = vunpack.c.l.b16 %v293
    %v542 = vunpack.c.h.b16 %v293
    %v543 = vunpack.c.l.b16 %v294
    %v544 = vunpack.c.h.b16 %v294
    %v545 = vunpack.c.l.b16 %v295
    %v546 = vunpack.c.h.b16 %v295
    %v547 = vunpack.c.l.b16 %v296
    %v548 = vunpack.c.h.b16 %v296
    %v549 = vunpack.c.l.b16 %v297
    %v550 = vunpack.c.h.b16 %v297
    %v551 = vunpack.c.l.b16 %v298
    %v552 = vunpack.c.h.b16 %v298
    %v553 = vunpack.c.l.b16 %v299
    %v554 = vunpack.c.h.b16 %v299
    %v555 = vunpack.c.l.b16 %v300
    %v556 = vunpack.c.h.b16 %v300
    %v557 = vunpack.c.l.b16 %v301
    %v558 = vunpack.c.h.b16 %v301
    %v559 = vunpack.c.l.b16 %v302
    %v560 = vunpack.c.h.b16 %v302
    %v561 = vunpack.c.l.b16 %v303
    %v562 = vunpack.c.h.b16 %v303
    %v563 = vunpack.c.l.b16 %v304
    %v564 = vunpack.c.h.b16 %v304
    %v565 = vunpack.c.l.b16 %v305
    %v566 = vunpack.c.h.b16 %v305
    %v567 = vunpack.c.l.b16 %v306
    %v568 = vunpack.c.h.b16 %v306
    %v569 = vunpack.c.l.b16 %v307
    %v570 = vunpack.c.h.b16 %v307
    %v571 = vunpack.c.l.b16 %v308
    %v572 = vunpack.c.h.b16 %v308
    %v573 = vunpack.c.l.b16 %v309
    %v574 = vunpack.c.h.b16 %v309
    %v575 = vunpack.c.l.b16 %v310
    %v576 = vunpack.c.h.b16 %v310
    %v577 = vunpack.c.l.b16 %v311
    %v578 = vunpack.c.h.b16 %v311
    %v579 = vunpack.c.l.b16 %v312
    %v580 = vunpack.c.h.b16 %v312
    %v581 = vunpack.c.l.b16 %v313
    %v582 = vunpack.c.h.b16 %v313
    %v583 = vunpack.c.l.b16 %v314
    %v584 = vunpack.c.h.b16 %v314
    %v585 = vunpack.c.l.b16 %v315
    %v586 = vunpack.c.h.b16 %v315
    %v587 = vpack.c.b16 %v461, %v459
    %v588 = vpack.c.b16 %v462, %v460
    %v589 = vpack.c.b16 %v465, %v463
    %v590 = vpack.c.b16 %v466, %v464
    %v591 = vpack.c.b16 %v469, %v467
    %v592 = vpack.c.b16 %v470, %v468
    %v593 = vpack.c.b16 %v473, %v471
    %v594 = vpack.c.b16 %v474, %v472
    %v595 = vpack.c.b16 %v477, %v475
    %v596 = vpack.c.b16 %v478, %v476
    %v597 = vpack.c.b16 %v481, %v479
    %v598 = vpack.c.b16 %v482, %v480
    %v599 = vpack.c.b16 %v485, %v483
    %v600 = vpack.c.b16 %v486, %v484
    %v601 = vpack.c.b16 %v489, %v487
    %v602 = vpack.c.b16 %v490, %v488
    %v603 = vpack.c.b16 %v493, %v491
    %v604 = vpack.c.b16 %v494, %v492
    %v605 = vpack.c.b16 %v497, %v495
    %v606 = vpack.c.b16 %v498, %v496
    %v607 = vpack.c.b16 %v501, %v499
    %v608 = vpack.c.b16 %v502, %v500
    %v609 = vpack.c.b16 %v505, %v503
    %v610 = vpack.c.b16 %v506, %v504
    %v611 = vpack.c.b16 %v509, %v507
    %v612 = vpack.c.b16 %v510, %v508
    %v613 = vpack.c.b16 %v513, %v511
    %v614 = vpack.c.b16 %v514, %v512
    %v615 = vpack.c.b16 %v517, %v515
    %v616 = vpack.c.b16 %v518, %v516
    %v617 = vpack.c.b16 %v521, %v519
    %v618 = vpack.c.b16 %v522, %v520
    %v619 = vpack.c.b16 %v525, %v523
    %v620 = vpack.c.b16 %v526, %v524
    %v621 = vpack.c.b16 %v529, %v527
    %v622 = vpack.c.b16 %v530, %v528
    %v623 = vpack.c.b16 %v533, %v531
    %v624 = vpack.c.b16 %v534, %v532
    %v625 = vpack.c.b16 %v537, %v535
    %v626 = vpack.c.b16 %v538, %v536
    %v627 = vpack.c.b16 %v541, %v539
    %v628 = vpack.c.b16 %v542, %v540
    %v629 = vpack.c.b16 %v545, %v543
    %v630 = vpack.c.b16 %v546, %v544
    %v631 = vpack.c.b16 %v549, %v547
    %v632 = vpack.c.b16 %v550, %v548
    %v633 = vpack.c.b16 %v553, %v551
    %v634 = vpack.c.b16 %v554, %v552
    %v635 = vpack.c.b16 %v557, %v555
    %v636 = vpack.c.b16 %v558, %v556
    %v637 = vpack.c.b16 %v561, %v559
    %v638 = vpack.c.b16 %v562, %v560
    %v639 = vpack.c.b16 %v565, %v563
    %v640 = vpack.c.b16 %v566, %v564
    %v641 = vpack.c.b16 %v569, %v567
    %v642 = vpack.c.b16 %v570, %v568
    %v643 = vpack.c.b16 %v573, %v571
    %v644 = vpack.c.b16 %v574, %v572
    %v645 = vpack.c.b16 %v577, %v575
    %v646 = vpack.c.b16 %v578, %v576
    %v647 = vpack.c.b16 %v581, %v579
    %v648 = vpack.c.b16 %v582, %v580
    %v649 = vpack.c.b16 %v585, %v583
    %v650 = vpack.c.b16 %v586, %v584
    %715 = vmatprep.subr.bf16.mxu0 %v602
    %716 = vmatpush1.bf16.msra.mxu0 %v601
    %717 = vmatprep.subr.bf16.mxu0 %v600
    %718 = vmatpush1.bf16.msra.mxu0 %v599
    %719 = vmatprep.subr.bf16.mxu0 %v598
    %720 = vmatpush1.bf16.msra.mxu0 %v597
    %721 = vmatprep.subr.bf16.mxu0 %v596
    %722 = vmatpush1.bf16.msra.mxu0 %v595
    %723 = vmatprep.subr.bf16.mxu0 %v594
    %724 = vmatpush1.bf16.msra.mxu0 %v593
    %725 = vmatprep.subr.bf16.mxu0 %v592
    %726 = vmatpush1.bf16.msra.mxu0 %v591
    %727 = vmatprep.subr.bf16.mxu0 %v590
    %728 = vmatpush1.bf16.msra.mxu0 %v589
    %729 = vmatprep.subr.bf16.mxu0 %v588
    %730 = vmatpush1.bf16.msra.mxu0 %v587
    %731 = vmatprep.subr.bf16.mxu0 %v618
    %732 = vmatpush2.bf16.msra.mxu0 %v617
    %733 = vmatprep.subr.bf16.mxu0 %v616
    %734 = vmatpush2.bf16.msra.mxu0 %v615
    %735 = vmatprep.subr.bf16.mxu0 %v614
    %736 = vmatpush2.bf16.msra.mxu0 %v613
    %737 = vmatprep.subr.bf16.mxu0 %v612
    %738 = vmatpush2.bf16.msra.mxu0 %v611
    %739 = vmatprep.subr.bf16.mxu0 %v610
    %740 = vmatpush2.bf16.msra.mxu0 %v609
    %741 = vmatprep.subr.bf16.mxu0 %v608
    %742 = vmatpush2.bf16.msra.mxu0 %v607
    %743 = vmatprep.subr.bf16.mxu0 %v606
    %744 = vmatpush2.bf16.msra.mxu0 %v605
    %745 = vmatprep.subr.bf16.mxu0 %v604
    %746 = vmatpush2.bf16.msra.mxu0 %v603
    %747 = vmatprep.mubr.bf16.mxu0 %v249
    %748 = vmatmul.mubr.bf16.gmra.mxu0 %v248
    %v749 = vpop.f32.mrf.mxu0
    %v750 = vadd.f32 %v387, %v749
    %v751 = vpop.f32.mrf.mxu0
    %v752 = vadd.f32 %v389, %v751
    %v753 = vpop.f32.mrf.mxu0
    %v754 = vadd.f32 %v391, %v753
    %v755 = vpop.f32.mrf.mxu0
    %v756 = vadd.f32 %v393, %v755
    %757 = vdwg.mxu0
    %758 = vmatprep.subr.bf16.mxu0 %v634
    %759 = vmatpush1.bf16.msra.mxu0 %v633
    %760 = vmatprep.subr.bf16.mxu0 %v632
    %761 = vmatpush1.bf16.msra.mxu0 %v631
    %762 = vmatprep.subr.bf16.mxu0 %v630
    %763 = vmatpush1.bf16.msra.mxu0 %v629
    %764 = vmatprep.subr.bf16.mxu0 %v628
    %765 = vmatpush1.bf16.msra.mxu0 %v627
    %766 = vmatprep.subr.bf16.mxu0 %v626
    %767 = vmatpush1.bf16.msra.mxu0 %v625
    %768 = vmatprep.subr.bf16.mxu0 %v624
    %769 = vmatpush1.bf16.msra.mxu0 %v623
    %770 = vmatprep.subr.bf16.mxu0 %v622
    %771 = vmatpush1.bf16.msra.mxu0 %v621
    %772 = vmatprep.subr.bf16.mxu0 %v620
    %773 = vmatpush1.bf16.msra.mxu0 %v619
    %774 = vmatprep.subr.bf16.mxu0 %v650
    %775 = vmatpush2.bf16.msra.mxu0 %v649
    %776 = vmatprep.subr.bf16.mxu0 %v648
    %777 = vmatpush2.bf16.msra.mxu0 %v647
    %778 = vmatprep.subr.bf16.mxu0 %v646
    %779 = vmatpush2.bf16.msra.mxu0 %v645
    %780 = vmatprep.subr.bf16.mxu0 %v644
    %781 = vmatpush2.bf16.msra.mxu0 %v643
    %782 = vmatprep.subr.bf16.mxu0 %v642
    %783 = vmatpush2.bf16.msra.mxu0 %v641
    %784 = vmatprep.subr.bf16.mxu0 %v640
    %785 = vmatpush2.bf16.msra.mxu0 %v639
    %786 = vmatprep.subr.bf16.mxu0 %v638
    %787 = vmatpush2.bf16.msra.mxu0 %v637
    %788 = vmatprep.subr.bf16.mxu0 %v636
    %789 = vmatpush2.bf16.msra.mxu0 %v635
    %790 = vmatprep.mubr.bf16.mxu0 %v251
    %791 = vmatmul.mubr.bf16.gmra.mxu0 %v250
    %v792 = vpop.f32.mrf.mxu0
    %v793 = vadd.f32 %v750, %v792
    %v794 = vpop.f32.mrf.mxu0
    %v795 = vadd.f32 %v752, %v794
    %v796 = vpop.f32.mrf.mxu0
    %v797 = vadd.f32 %v754, %v796
    %v798 = vpop.f32.mrf.mxu0
    %v799 = vadd.f32 %v756, %v798
    %800 = vdwg.mxu0
    %v802 = vlaneseq
    %v803 = vshrl.u32 %v802, 7
    %v804 = vsub.s32 0, %v803
    %v805 = vrot.slane %v49, %v804
    %v806 = vlaneseq
    %v807 = vshrl.u32 %v806, 7
    %v808 = vsub.s32 1, %v807
    %v809 = vrot.slane %v49, %v808
    %v812 = vadd.f32 %v793, %v805
    %v813 = vadd.f32 %v795, %v809
    %v814 = vadd.f32 %v797, %v805
    %v815 = vadd.f32 %v799, %v809
    %v816 = vmax.f32 %v812, 0.0
    %v817 = vmax.f32 %v813, 0.0
    %v818 = vmax.f32 %v814, 0.0
    %v819 = vmax.f32 %v815, 0.0
    %v820 = vld [vmem:[%s4] sm:$0xff]
    %v821 = vld [vmem:[%s4 + $0x8] sm:$0xff]
    %v822 = vld [vmem:[%s4 + $0x10] sm:$0xff]
    %v823 = vld [vmem:[%s4 + $0x18] sm:$0xff]
    %v824 = vld [vmem:[%s4 + $0x20] sm:$0xff]
    %v825 = vld [vmem:[%s4 + $0x28] sm:$0xff]
    %v826 = vld [vmem:[%s4 + $0x30] sm:$0xff]
    %v827 = vld [vmem:[%s4 + $0x38] sm:$0xff]
    %v828 = vld [vmem:[%s4 + $0x40] sm:$0xff]
    %v829 = vld [vmem:[%s4 + $0x48] sm:$0xff]
    %v830 = vld [vmem:[%s4 + $0x50] sm:$0xff]
    %v831 = vld [vmem:[%s4 + $0x58] sm:$0xff]
    %v832 = vld [vmem:[%s4 + $0x60] sm:$0xff]
    %v833 = vld [vmem:[%s4 + $0x68] sm:$0xff]
    %v834 = vld [vmem:[%s4 + $0x70] sm:$0xff]
    %v835 = vld [vmem:[%s4 + $0x78] sm:$0xff]
    %v836 = vld [vmem:[%s4 + $0x80] sm:$0xff]
    %v837 = vld [vmem:[%s4 + $0x88] sm:$0xff]
    %v838 = vld [vmem:[%s4 + $0x90] sm:$0xff]
    %v839 = vld [vmem:[%s4 + $0x98] sm:$0xff]
    %v840 = vld [vmem:[%s4 + $0xa0] sm:$0xff]
    %v841 = vld [vmem:[%s4 + $0xa8] sm:$0xff]
    %v842 = vld [vmem:[%s4 + $0xb0] sm:$0xff]
    %v843 = vld [vmem:[%s4 + $0xb8] sm:$0xff]
    %v844 = vld [vmem:[%s4 + $0xc0] sm:$0xff]
    %v845 = vld [vmem:[%s4 + $0xc8] sm:$0xff]
    %v846 = vld [vmem:[%s4 + $0xd0] sm:$0xff]
    %v847 = vld [vmem:[%s4 + $0xd8] sm:$0xff]
    %v848 = vld [vmem:[%s4 + $0xe0] sm:$0xff]
    %v849 = vld [vmem:[%s4 + $0xe8] sm:$0xff]
    %v850 = vld [vmem:[%s4 + $0xf0] sm:$0xff]
    %v851 = vld [vmem:[%s4 + $0xf8] sm:$0xff]
    %v853 = vlaneseq
    %v854 = vshrl.u32 %v853, 7
    %v855 = vsub.s32 0, %v854
    %v856 = vrot.slane %v50, %v855
    %858 = vmatprep.subr.mxu0 0.0
    %859 = vmatpush1.msra.mxu0 %v835
    %860 = vmatprep.subr.mxu0 0.0
    %861 = vmatpush1.msra.mxu0 %v834
    %862 = vmatprep.subr.mxu0 0.0
    %863 = vmatpush1.msra.mxu0 %v833
    %864 = vmatprep.subr.mxu0 0.0
    %865 = vmatpush1.msra.mxu0 %v832
    %866 = vmatprep.subr.mxu0 0.0
    %867 = vmatpush1.msra.mxu0 %v831
    %868 = vmatprep.subr.mxu0 0.0
    %869 = vmatpush1.msra.mxu0 %v830
    %870 = vmatprep.subr.mxu0 0.0
    %871 = vmatpush1.msra.mxu0 %v829
    %872 = vmatprep.subr.mxu0 0.0
    %873 = vmatpush1.msra.mxu0 %v828
    %874 = vmatprep.subr.mxu0 0.0
    %875 = vmatpush1.msra.mxu0 %v827
    %876 = vmatprep.subr.mxu0 0.0
    %877 = vmatpush1.msra.mxu0 %v826
    %878 = vmatprep.subr.mxu0 0.0
    %879 = vmatpush1.msra.mxu0 %v825
    %880 = vmatprep.subr.mxu0 0.0
    %881 = vmatpush1.msra.mxu0 %v824
    %882 = vmatprep.subr.mxu0 0.0
    %883 = vmatpush1.msra.mxu0 %v823
    %884 = vmatprep.subr.mxu0 0.0
    %885 = vmatpush1.msra.mxu0 %v822
    %886 = vmatprep.subr.mxu0 0.0
    %887 = vmatpush1.msra.mxu0 %v821
    %888 = vmatprep.subr.mxu0 0.0
    %889 = vmatpush1.msra.mxu0 %v820
    %890 = vmatprep.subr.mxu0 0.0
    %891 = vmatpush2.msra.mxu0 %v851
    %892 = vmatprep.subr.mxu0 0.0
    %893 = vmatpush2.msra.mxu0 %v850
    %894 = vmatprep.subr.mxu0 0.0
    %895 = vmatpush2.msra.mxu0 %v849
    %896 = vmatprep.subr.mxu0 0.0
    %897 = vmatpush2.msra.mxu0 %v848
    %898 = vmatprep.subr.mxu0 0.0
    %899 = vmatpush2.msra.mxu0 %v847
    %900 = vmatprep.subr.mxu0 0.0
    %901 = vmatpush2.msra.mxu0 %v846
    %902 = vmatprep.subr.mxu0 0.0
    %903 = vmatpush2.msra.mxu0 %v845
    %904 = vmatprep.subr.mxu0 0.0
    %905 = vmatpush2.msra.mxu0 %v844
    %906 = vmatprep.subr.mxu0 0.0
    %907 = vmatpush2.msra.mxu0 %v843
    %908 = vmatprep.subr.mxu0 0.0
    %909 = vmatpush2.msra.mxu0 %v842
    %910 = vmatprep.subr.mxu0 0.0
    %911 = vmatpush2.msra.mxu0 %v841
    %912 = vmatprep.subr.mxu0 0.0
    %913 = vmatpush2.msra.mxu0 %v840
    %914 = vmatprep.subr.mxu0 0.0
    %915 = vmatpush2.msra.mxu0 %v839
    %916 = vmatprep.subr.mxu0 0.0
    %917 = vmatpush2.msra.mxu0 %v838
    %918 = vmatprep.subr.mxu0 0.0
    %919 = vmatpush2.msra.mxu0 %v837
    %920 = vmatprep.subr.mxu0 0.0
    %921 = vmatpush2.msra.mxu0 %v836
    %922 = vmatprep.mubr.f32.mxu0 %v817
    %923 = vmatmul.mubr.f32.gmra.mxu0 %v816
    %v924 = vpop.f32.mrf.mxu0
    %v925 = vadd.f32 %v856, %v924
    %v926 = vpop.f32.mrf.mxu0
    %927 = vmatprep.mubr.f32.mxu0 %v819
    %928 = vmatmul.mubr.f32.gmra.mxu0 %v818
    %v929 = vpop.f32.mrf.mxu0
    %v930 = vadd.f32 %v856, %v929
    %v931 = vpop.f32.mrf.mxu0
    %932 = vdwg.mxu0
    %v933 = vmax.f32 %v925, 0.0
    %v934 = vmax.f32 %v930, 0.0
    %v935 = vld [vmem:[%s5] sm:$0xff]
    %v936 = vld [vmem:[%s5 + $0x8] sm:$0xff]
    %v937 = vld [vmem:[%s5 + $0x10] sm:$0xff]
    %v938 = vld [vmem:[%s5 + $0x18] sm:$0xff]
    %v939 = vld [vmem:[%s5 + $0x20] sm:$0xff]
    %v940 = vld [vmem:[%s5 + $0x28] sm:$0xff]
    %v941 = vld [vmem:[%s5 + $0x30] sm:$0xff]
    %v942 = vld [vmem:[%s5 + $0x38] sm:$0xff]
    %v944 = vlaneseq
    %v945 = vshrl.u32 %v944, 7
    %v946 = vsub.s32 0, %v945
    %v947 = vrot.slane %v51, %v946
    %vm949 = vcmask 523264
    %v951 = vsel %vm949, %v933, 0
    %v954 = vsel %vm949, %v934, 0
    %956 = vmatprep.subr.mxu0 0.0
    %957 = vmatpush1.msra.mxu0 0.0
    %958 = vmatprep.subr.mxu0 0.0
    %959 = vmatpush1.msra.mxu0 0.0
    %960 = vmatprep.subr.mxu0 0.0
    %961 = vmatpush1.msra.mxu0 0.0
    %962 = vmatprep.subr.mxu0 0.0
    %963 = vmatpush1.msra.mxu0 0.0
    %964 = vmatprep.subr.mxu0 0.0
    %965 = vmatpush1.msra.mxu0 0.0
    %966 = vmatprep.subr.mxu0 0.0
    %967 = vmatpush1.msra.mxu0 0.0
    %968 = vmatprep.subr.mxu0 0.0
    %969 = vmatpush1.msra.mxu0 0.0
    %970 = vmatprep.subr.mxu0 0.0
    %971 = vmatpush1.msra.mxu0 0.0
    %972 = vmatprep.subr.mxu0 0.0
    %973 = vmatpush1.msra.mxu0 %v942
    %974 = vmatprep.subr.mxu0 0.0
    %975 = vmatpush1.msra.mxu0 %v941
    %976 = vmatprep.subr.mxu0 0.0
    %977 = vmatpush1.msra.mxu0 %v940
    %978 = vmatprep.subr.mxu0 0.0
    %979 = vmatpush1.msra.mxu0 %v939
    %980 = vmatprep.subr.mxu0 0.0
    %981 = vmatpush1.msra.mxu0 %v938
    %982 = vmatprep.subr.mxu0 0.0
    %983 = vmatpush1.msra.mxu0 %v937
    %984 = vmatprep.subr.mxu0 0.0
    %985 = vmatpush1.msra.mxu0 %v936
    %986 = vmatprep.subr.mxu0 0.0
    %987 = vmatpush1.msra.mxu0 %v935
    %988 = vmatprep.subr.mxu0 0.0
    %989 = vmatpush2.msra.mxu0 0.0
    %990 = vmatprep.subr.mxu0 0.0
    %991 = vmatpush2.msra.mxu0 0.0
    %992 = vmatprep.subr.mxu0 0.0
    %993 = vmatpush2.msra.mxu0 0.0
    %994 = vmatprep.subr.mxu0 0.0
    %995 = vmatpush2.msra.mxu0 0.0
    %996 = vmatprep.subr.mxu0 0.0
    %997 = vmatpush2.msra.mxu0 0.0
    %998 = vmatprep.subr.mxu0 0.0
    %999 = vmatpush2.msra.mxu0 0.0
    %1000 = vmatprep.subr.mxu0 0.0
    %1001 = vmatpush2.msra.mxu0 0.0
    %1002 = vmatprep.subr.mxu0 0.0
    %1003 = vmatpush2.msra.mxu0 0.0
    %1004 = vmatprep.subr.mxu0 0.0
    %1005 = vmatpush2.msra.mxu0 0.0
    %1006 = vmatprep.subr.mxu0 0.0
    %1007 = vmatpush2.msra.mxu0 0.0
    %1008 = vmatprep.subr.mxu0 0.0
    %1009 = vmatpush2.msra.mxu0 0.0
    %1010 = vmatprep.subr.mxu0 0.0
    %1011 = vmatpush2.msra.mxu0 0.0
    %1012 = vmatprep.subr.mxu0 0.0
    %1013 = vmatpush2.msra.mxu0 0.0
    %1014 = vmatprep.subr.mxu0 0.0
    %1015 = vmatpush2.msra.mxu0 0.0
    %1016 = vmatprep.subr.mxu0 0.0
    %1017 = vmatpush2.msra.mxu0 0.0
    %1018 = vmatprep.subr.mxu0 0.0
    %1019 = vmatpush2.msra.mxu0 0.0
    %1020 = vmatprep.mubr.f32.mxu0 0.0
    %1021 = vmatmul.mubr.f32.gmra.mxu0 %v951
    %v1022 = vpop.f32.mrf.mxu0
    %v1023 = vadd.f32 %v947, %v1022
    %v1024 = vpop.f32.mrf.mxu0
    %1025 = vmatprep.mubr.f32.mxu0 0.0
    %1026 = vmatmul.mubr.f32.gmra.mxu0 %v954
    %v1027 = vpop.f32.mrf.mxu0
    %v1028 = vadd.f32 %v947, %v1027
    %v1029 = vpop.f32.mrf.mxu0
    %1030 = vdwg.mxu0
    %v1031 = vmax.f32 %v1023, 0.0
    %v1032 = vmax.f32 %v1028, 0.0
    %v1033 = vld [vmem:[%s6] sm:$0x1]
    %1035 = vset.pattern.permute.xlu0 0
    %1036 = vperm.xlu0 %1035, %v52
    %v1037 = vpop.permute.xlu0 %1036
    %v1039 = vlaneseq
    %v1040 = vshrl.u32 %v1039, 7
    %v1041 = vsub.s32 0, %v1040
    %v1042 = vrot.slane %v1037, %v1041
    %vm1043 = vcmask 130048
    %v1045 = vsel %vm1043, %v1033, 0
    %v1048 = vsel %vm1043, %v1031, 0
    %v1051 = vsel %vm1043, %v1032, 0
    %1053 = vmatprep.subr.mxu0 0.0
    %1054 = vmatpush1.xpose.msra.mxu0 0.0
    %1055 = vmatprep.subr.mxu0 0.0
    %1056 = vmatpush1.xpose.msra.mxu0 0.0
    %1057 = vmatprep.subr.mxu0 0.0
    %1058 = vmatpush1.xpose.msra.mxu0 0.0
    %1059 = vmatprep.subr.mxu0 0.0
    %1060 = vmatpush1.xpose.msra.mxu0 0.0
    %1061 = vmatprep.subr.mxu0 0.0
    %1062 = vmatpush1.xpose.msra.mxu0 0.0
    %1063 = vmatprep.subr.mxu0 0.0
    %1064 = vmatpush1.xpose.msra.mxu0 0.0
    %1065 = vmatprep.subr.mxu0 0.0
    %1066 = vmatpush1.xpose.msra.mxu0 0.0
    %1067 = vmatprep.subr.mxu0 0.0
    %1068 = vmatpush1.xpose.msra.mxu0 0.0
    %1069 = vmatprep.subr.mxu0 0.0
    %1070 = vmatpush1.xpose.msra.mxu0 0.0
    %1071 = vmatprep.subr.mxu0 0.0
    %1072 = vmatpush1.xpose.msra.mxu0 0.0
    %1073 = vmatprep.subr.mxu0 0.0
    %1074 = vmatpush1.xpose.msra.mxu0 0.0
    %1075 = vmatprep.subr.mxu0 0.0
    %1076 = vmatpush1.xpose.msra.mxu0 0.0
    %1077 = vmatprep.subr.mxu0 0.0
    %1078 = vmatpush1.xpose.msra.mxu0 0.0
    %1079 = vmatprep.subr.mxu0 0.0
    %1080 = vmatpush1.xpose.msra.mxu0 0.0
    %1081 = vmatprep.subr.mxu0 0.0
    %1082 = vmatpush1.xpose.msra.mxu0 %v1051
    %1083 = vmatprep.subr.mxu0 0.0
    %1084 = vmatpush1.xpose.msra.mxu0 %v1048
    %1085 = vmatprep.subr.mxu0 0.0
    %1086 = vmatpush2.xpose.msra.mxu0 0.0
    %1087 = vmatprep.subr.mxu0 0.0
    %1088 = vmatpush2.xpose.msra.mxu0 0.0
    %1089 = vmatprep.subr.mxu0 0.0
    %1090 = vmatpush2.xpose.msra.mxu0 0.0
    %1091 = vmatprep.subr.mxu0 0.0
    %1092 = vmatpush2.xpose.msra.mxu0 0.0
    %1093 = vmatprep.subr.mxu0 0.0
    %1094 = vmatpush2.xpose.msra.mxu0 0.0
    %1095 = vmatprep.subr.mxu0 0.0
    %1096 = vmatpush2.xpose.msra.mxu0 0.0
    %1097 = vmatprep.subr.mxu0 0.0
    %1098 = vmatpush2.xpose.msra.mxu0 0.0
    %1099 = vmatprep.subr.mxu0 0.0
    %1100 = vmatpush2.xpose.msra.mxu0 0.0
    %1101 = vmatprep.subr.mxu0 0.0
    %1102 = vmatpush2.xpose.msra.mxu0 0.0
    %1103 = vmatprep.subr.mxu0 0.0
    %1104 = vmatpush2.xpose.msra.mxu0 0.0
    %1105 = vmatprep.subr.mxu0 0.0
    %1106 = vmatpush2.xpose.msra.mxu0 0.0
    %1107 = vmatprep.subr.mxu0 0.0
    %1108 = vmatpush2.xpose.msra.mxu0 0.0
    %1109 = vmatprep.subr.mxu0 0.0
    %1110 = vmatpush2.xpose.msra.mxu0 0.0
    %1111 = vmatprep.subr.mxu0 0.0
    %1112 = vmatpush2.xpose.msra.mxu0 0.0
    %1113 = vmatprep.subr.mxu0 0.0
    %1114 = vmatpush2.xpose.msra.mxu0 0.0
    %1115 = vmatprep.subr.mxu0 0.0
    %1116 = vmatpush2.xpose.msra.mxu0 0.0
    %1117 = vmatprep.mubr.f32.mxu0 0.0
    %1118 = vmatmul.mubr.f32.gmra.mxu0 %v1045
    %v1119 = vpop.f32.mrf.mxu0
    %v1120 = vadd.f32 %v1042, %v1119
    %v1121 = vpop.f32.mrf.mxu0
    %1122 = vdwg.mxu0
    %vm1123 = vcmask 122880
    %1124 = vst.msk [vmem:[#allocation5] sm:$0x1] %vm1123, %v1120
    // Predicated region
    $region38: #{tpu_custom_call.1} parent=1 // pred_check
      _
    $region39: #{tpu_custom_call.1} parent=1 // pred_check_branch
      %1126 = sbr.rel (0) target = $region41
    $region40: #{tpu_custom_call.1} parent=1 // pred_region
      %s1128 = ssub.s32 16, 16
      %1129 = vsyncadd [#allocation4], %s1128
      %s1131 = sshll.u32 [#allocation5], 4
      %s1132 = int_to_ptr.vmem [resolvable:$true] %s1131
      %1134 = dma.vmem_to_hbm [thread:$0]  %s1132, 16, %s8, [#allocation4]
    $region41: #{tpu_custom_call.1} parent=1 // pred_fallthru
      _
    // Predicated region
    $region42: #{tpu_custom_call.1} parent=1 // pred_check
      _
    $region43: #{tpu_custom_call.1} parent=1 // pred_check_branch
      %1136 = sbr.rel (0) target = $region45
    $region44: #{tpu_custom_call.1} parent=1 // pred_region
      %1137 = dma.done [#allocation4], 16
    $region45: #{tpu_custom_call.1} parent=1 // pred_fallthru
      _
    %1138 = vsyncpa [#allocation3], 1
    %1139 = vsyncpa [#allocation4], 1

</llo_original>
